<compile_context>
chip_gen: v7x
topology: tpu7x:2x2x1
jax: 0.10.0
libtpu: 0.0.40
codegen_flags: <defaults>
</compile_context>

<pallas_src>
import functools

import jax
import jax.numpy as jnp
from jax import lax
from jax.experimental import pallas as pl
from jax.experimental.pallas import tpu as pltpu

ALPHA = 0.25
GAMMA = 2.0
REDUCTION = "mean"  # module default; 'mean' | 'sum' | 'none' all supported


def _round_up(x, m):
    return ((x + m - 1) // m) * m


def _sublane_multiple(itemsize):
    # Native packing: f32 tiles as (8,128), bf16 as (16,128), int8/fp8 as (32,128).
    return max(8, 32 // max(1, itemsize))


def _choose_tile_n(n, c, itemsize, tile_bytes=4 * 1024 * 1024, max_rows=2048):
    """Rows per grid step.

    Large enough to amortize the ~0.35us/step grid overhead, small enough that
    (a) the double-buffered (tile_n, C) logits tile and (b) the 128-lane-padded
    (tile_n, 1) per-row intermediates stay well inside the 32 MiB scoped VMEM
    budget on every generation (incl. v7x's 64 MiB physical VMEM / 2 TCs).
    """
    sub = _sublane_multiple(itemsize)
    rows = max(sub, tile_bytes // max(1, c * itemsize))
    rows = min(rows, max_rows)
    # Guarantee >= 2 grid tiles whenever N allows, so both v7x TensorCores
    # (grid axis is "parallel") get work instead of one idling.
    if n >= 2 * sub:
        rows = min(rows, _round_up(pl.cdiv(n, 2), sub))
    # Keep the block inside the (unpadded) array whenever possible so the only
    # ragged block is the final partial one.
    rows = min(rows, max(sub, (n // sub) * sub))
    rows = max(sub, (rows // sub) * sub)
    return int(rows)


def _focal_kernel(logits_ref, targets_ref, out_ref, *, n_total, tile_n, alpha,
                  gamma, mode):
    # logits_ref: (tile_n, C) native dtype; targets_ref: (tile_n, 1) int32.
    # Cast in-kernel (the kernel streams native-dtype logits from HBM).
    x = logits_ref[...].astype(jnp.float32)
    tgt = targets_ref[...]                                   # (tile_n, 1)
    tn, c = x.shape

    # Numerically stable log-sum-exp -> per-row cross entropy.
    m = jnp.max(x, axis=-1, keepdims=True)                   # (tn, 1)
    sumexp = jnp.sum(jnp.exp(x - m), axis=-1, keepdims=True)  # (tn, 1)

    # Gather the logit at the target class with a select (no one-hot f32
    # multiply: saves two full (tn, C) VPU passes).
    class_ids = lax.broadcasted_iota(jnp.int32, (tn, c), 1)
    picked = jnp.sum(jnp.where(class_ids == tgt, x, 0.0),
                     axis=-1, keepdims=True)                  # (tn, 1)

    ce = jnp.maximum(m + jnp.log(sumexp) - picked, 0.0)       # clamp round-off
    pt = jnp.exp(-ce)
    u = 1.0 - pt
    if float(gamma) == 2.0:
        w = u * u                                             # avoid float pow
    else:
        w = jnp.power(jnp.maximum(u, 0.0), jnp.float32(gamma))
    focal = jnp.float32(alpha) * w * ce                       # (tn, 1)

    # Mask rows past N: inputs are NOT padded, so the trailing rows of the
    # final partial block hold stale VMEM data.  jnp.where does not propagate
    # NaN/garbage from the masked branch.
    row = pl.program_id(0) * tile_n + lax.broadcasted_iota(jnp.int32, (tn, 1), 0)
    focal = jnp.where(row < n_total, focal, 0.0)

    if mode == "none":
        out_ref[...] = focal                                  # per-row losses
        # TODO(synk): lane-dense (1, 1, tile_n) store (needs the column->row
        # relayout noted at the top of the file).
    else:
        # One lane-dense (1, 1, 128) partial-sum slab per tile; the wrapper
        # reduces over tiles.
        out_ref[...] = jnp.full((1, 1, 128), jnp.sum(focal), dtype=jnp.float32)


def focal_loss(logits, targets, alpha=ALPHA, gamma=GAMMA, reduction=REDUCTION,
               tile_n=None):
    """logits: (N, C) float, targets: (N,) int.

    Returns a scalar for 'mean'/'sum', an (N,) f32 vector for 'none'.
    """
    n, c = logits.shape
    itemsize = jnp.dtype(logits.dtype).itemsize
    if tile_n is None:
        tile_n = _choose_tile_n(n, c, itemsize)
    num_tiles = pl.cdiv(n, tile_n)

    # Tiny (N,) int cast/reshape only -- no padded copy of the (N, C) logits.
    targets2d = targets.astype(jnp.int32).reshape(n, 1)

    mode = "none" if reduction == "none" else "sum"
    kernel = functools.partial(
        _focal_kernel, n_total=n, tile_n=tile_n, alpha=float(alpha),
        gamma=float(gamma), mode=mode)

    if mode == "none":
        # Output is freshly allocated, so padding it (rows beyond N are zeroed
        # by the in-kernel mask and sliced off below) costs no extra HBM read.
        out_shape = jax.ShapeDtypeStruct((num_tiles * tile_n, 1), jnp.float32)
        out_spec = pl.BlockSpec((tile_n, 1), lambda i: (i, 0))
    else:
        out_shape = jax.ShapeDtypeStruct((num_tiles, 1, 128), jnp.float32)
        out_spec = pl.BlockSpec((1, 1, 128), lambda i: (i, 0, 0))

    out = pl.pallas_call(
        kernel,
        out_shape=out_shape,
        grid=(num_tiles,),
        in_specs=[
            pl.BlockSpec((tile_n, c), lambda i: (i, 0)),   # logits tile
            pl.BlockSpec((tile_n, 1), lambda i: (i, 0)),   # targets tile
        ],
        out_specs=out_spec,
        compiler_params=pltpu.CompilerParams(
            dimension_semantics=("parallel",),             # v7x: split tiles across TCs
            vmem_limit_bytes=32 * 1024 * 1024,
        ),
    )(logits, targets2d)

    if mode == "none":
        return out[:n, 0]
    total = jnp.sum(out[:, 0, 0])
    if reduction == "mean":
        return total / jnp.float32(n)
    return total  # 'sum'


def _focal_loss_ref(logits, targets, alpha=ALPHA, gamma=GAMMA,
                    reduction=REDUCTION):
    logp = jax.nn.log_softmax(logits.astype(jnp.float32), axis=-1)
    ce = -jnp.take_along_axis(
        logp, targets[:, None].astype(jnp.int32), axis=-1)[:, 0]
    pt = jnp.exp(-ce)
    focal = alpha * (1.0 - pt) ** gamma * ce
    if reduction == "mean":
        return focal.mean()
    elif reduction == "sum":
        return focal.sum()
    return focal


if __name__ == "__main__":
    key = jax.random.PRNGKey(0)
    k1, k2, k3, k4, k5, k6 = jax.random.split(key, 6)

    # Case 1: ragged N (13 % 8 != 0), un-padded inputs -> exercises partial
    # last-block read + in-kernel mask, for all three reductions.
    N1, C1 = 13, 32
    logits1 = jax.random.normal(k1, (N1, C1), dtype=jnp.float32)
    targets1 = jax.random.randint(k2, (N1,), 0, C1, dtype=jnp.int32)
    for red in ("mean", "sum", "none"):
        out = jax.block_until_ready(focal_loss(logits1, targets1, reduction=red))
        ref = _focal_loss_ref(logits1, targets1, reduction=red)
        assert jnp.allclose(out, ref, atol=1e-5, rtol=1e-5), (red, out, ref)

    # Case 2: force small tiles -> multi-tile pipeline with per-tile partial
    # sums and a ragged final tile, for all three reductions.
    N2, C2 = 20, 32
    logits2 = jax.random.normal(k3, (N2, C2), dtype=jnp.float32)
    targets2 = jax.random.randint(k4, (N2,), 0, C2, dtype=jnp.int32)
    for red in ("mean", "sum", "none"):
        out = jax.block_until_ready(
            focal_loss(logits2, targets2, reduction=red, tile_n=8))
        ref = _focal_loss_ref(logits2, targets2, reduction=red)
        assert jnp.allclose(out, ref, atol=1e-5, rtol=1e-5), (red, out, ref)

    # Case 3: bf16 logits -> native-dtype DMA + in-kernel f32 cast and the
    # 16-row sublane rounding for 2-byte dtypes.
    N3, C3 = 24, 32
    logits3 = jax.random.normal(k5, (N3, C3), dtype=jnp.float32).astype(jnp.bfloat16)
    targets3 = jax.random.randint(k6, (N3,), 0, C3, dtype=jnp.int32)
    out3 = jax.block_until_ready(focal_loss(logits3, targets3, reduction="mean"))
    ref3 = _focal_loss_ref(logits3, targets3, reduction="mean")
    assert jnp.allclose(out3, ref3, atol=1e-5, rtol=1e-5), (out3, ref3)

    print("KERNEL_OK")
</pallas_src>

<mosaic_0001>
module attributes {stable_mosaic.version = 11 : i64} {
  func.func @_focal_kernel(%arg0: i32, %arg1: memref<8x32xf32, #tpu.memory_space<vmem>>, %arg2: memref<8x1xi32, #tpu.memory_space<vmem>>, %arg3: memref<1x1x128xf32, #tpu.memory_space<vmem>>) attributes {dimension_semantics = [#tpu.dimension_semantics<parallel>], iteration_bounds = array<i64: 2>, scalar_prefetch = 0 : i64, scratch_operands = 0 : i64, tpu.core_type = #tpu.core_type<tc>, window_params = [{transform_indices = @transform_0, window_bounds = array<i64: 8, 32>}, {transform_indices = @transform_1, window_bounds = array<i64: 8, 1>}, {transform_indices = @transform_2, window_bounds = array<i64: 1, 1, 128>}]} {
    %c0 = arith.constant 0 : index
    %c0_0 = arith.constant 0 : index
    %0 = vector.load %arg1[%c0, %c0_0] : memref<8x32xf32, #tpu.memory_space<vmem>>, vector<8x32xf32>
    %c0_1 = arith.constant 0 : index
    %c0_2 = arith.constant 0 : index
    %1 = vector.load %arg2[%c0_1, %c0_2] : memref<8x1xi32, #tpu.memory_space<vmem>>, vector<8x1xi32>
    %cst = arith.constant dense<0xFF800000> : vector<8xf32>
    %2 = vector.multi_reduction <maximumf>, %0, %cst [1] : vector<8x32xf32> to vector<8xf32>
    %3 = vector.shape_cast %2 : vector<8xf32> to vector<8x1xf32>
    %4 = vector.broadcast %3 : vector<8x1xf32> to vector<8x32xf32>
    %5 = arith.subf %0, %4 : vector<8x32xf32>
    %6 = math.exp %5 : vector<8x32xf32>
    %cst_3 = arith.constant dense<0.000000e+00> : vector<8xf32>
    %7 = vector.multi_reduction <add>, %6, %cst_3 [1] : vector<8x32xf32> to vector<8xf32>
    %8 = vector.shape_cast %7 : vector<8xf32> to vector<8x1xf32>
    %9 = tpu.iota {dimensions = array<i32: 1>} : vector<8x32xi32>
    %10 = vector.broadcast %1 : vector<8x1xi32> to vector<8x32xi32>
    %11 = arith.cmpi eq, %9, %10 : vector<8x32xi32>
    %cst_4 = arith.constant 0.000000e+00 : f32
    %12 = vector.broadcast %cst_4 : f32 to vector<8x32xf32>
    %13 = arith.select %11, %0, %12 : vector<8x32xi1>, vector<8x32xf32>
    %cst_5 = arith.constant dense<0.000000e+00> : vector<8xf32>
    %14 = vector.multi_reduction <add>, %13, %cst_5 [1] : vector<8x32xf32> to vector<8xf32>
    %15 = vector.shape_cast %14 : vector<8xf32> to vector<8x1xf32>
    %16 = math.log %8 : vector<8x1xf32>
    %17 = arith.addf %3, %16 : vector<8x1xf32>
    %18 = arith.subf %17, %15 : vector<8x1xf32>
    %cst_6 = arith.constant 0.000000e+00 : f32
    %19 = vector.broadcast %cst_6 : f32 to vector<8x1xf32>
    %20 = arith.maximumf %18, %19 : vector<8x1xf32>
    %cst_7 = arith.constant 0.000000e+00 : f32
    %21 = vector.broadcast %cst_7 : f32 to vector<8x1xf32>
    %22 = arith.subf %21, %20 : vector<8x1xf32>
    %23 = math.exp %22 : vector<8x1xf32>
    %cst_8 = arith.constant 1.000000e+00 : f32
    %24 = vector.broadcast %cst_8 : f32 to vector<8x1xf32>
    %25 = arith.subf %24, %23 : vector<8x1xf32>
    %26 = arith.mulf %25, %25 : vector<8x1xf32>
    %cst_9 = arith.constant 2.500000e-01 : f32
    %27 = vector.broadcast %cst_9 : f32 to vector<8x1xf32>
    %28 = arith.mulf %27, %26 : vector<8x1xf32>
    %29 = arith.mulf %28, %20 : vector<8x1xf32>
    %c8_i32 = arith.constant 8 : i32
    %30 = arith.muli %arg0, %c8_i32 : i32
    %31 = tpu.iota {dimensions = array<i32: 0>} : vector<8x1xi32>
    %32 = vector.broadcast %30 : i32 to vector<8x1xi32>
    %33 = arith.addi %32, %31 : vector<8x1xi32>
    %c13_i32 = arith.constant 13 : i32
    %34 = vector.broadcast %c13_i32 : i32 to vector<8x1xi32>
    %35 = arith.cmpi slt, %33, %34 : vector<8x1xi32>
    %cst_10 = arith.constant 0.000000e+00 : f32
    %36 = vector.broadcast %cst_10 : f32 to vector<8x1xf32>
    %37 = arith.select %35, %29, %36 : vector<8x1xi1>, vector<8x1xf32>
    %38 = vector.shape_cast %37 : vector<8x1xf32> to vector<1x8x1xf32>
    %cst_11 = arith.constant dense<0.000000e+00> : vector<1xf32>
    %39 = vector.multi_reduction <add>, %38, %cst_11 [1, 2] : vector<1x8x1xf32> to vector<1xf32>
    %40 = vector.shape_cast %39 : vector<1xf32> to vector<1x1x1xf32>
    %41 = vector.extract %40[0, 0, 0] : f32 from vector<1x1x1xf32>
    %42 = vector.broadcast %41 : f32 to vector<1x1x128xf32>
    %c0_12 = arith.constant 0 : index
    %c0_13 = arith.constant 0 : index
    %c0_14 = arith.constant 0 : index
    %43 = vector.load %arg3[%c0_12, %c0_13, %c0_14] : memref<1x1x128xf32, #tpu.memory_space<vmem>>, vector<1x1x128xf32>
    tpu.vector_store %arg3[%c0_12, %c0_13, %c0_14], %42 {strides = array<i32>} : memref<1x1x128xf32, #tpu.memory_space<vmem>>, vector<1x1x128xf32>,
    return
  }
  func.func @transform_0(%arg0: i32) -> (i32, i32) {
    %c0_i32 = arith.constant 0 : i32
    %c0_i32_0 = arith.constant 0 : i32
    return %arg0, %c0_i32 : i32, i32
  }
  func.func @transform_1(%arg0: i32) -> (i32, i32) {
    %c0_i32 = arith.constant 0 : i32
    %c0_i32_0 = arith.constant 0 : i32
    return %arg0, %c0_i32 : i32, i32
  }
  func.func @transform_2(%arg0: i32) -> (i32, i32, i32) {
    %c0_i32 = arith.constant 0 : i32
    %c0_i32_0 = arith.constant 0 : i32
    %c0_i32_1 = arith.constant 0 : i32
    return %arg0, %c0_i32, %c0_i32_0 : i32, i32, i32
  }
}

</mosaic_0001>

<llo_original>
// kernel: tpu_custom_call.1
$region0: #{tpu_custom_call.1}
  #allocation0 [shape = 'u32[]', space=smem, size = 0x4, offset = 0x4, fixed_abs, tag = 'smem constant byte address 0x4 - core index']
  #allocation1 [shape = 'u32[144,128]{1,0:T(1,128)}', space=vmem, size = 0x12000, scoped, tag = 'internal scratch']
  %s0 = inlined_call_operand.vmem [shape: f32[13,32], index: 0, kind: input, shape index: {}]
  %s1 = inlined_call_operand.vmem [shape: s32[13,1], index: 1, kind: input, shape index: {}]
  %s2 = inlined_call_operand.hbm [shape: f32[2,1,128], index: 2, kind: output, shape index: {}]
  %s3 = sld [smem:[#allocation0]]
  $region41: #{tpu_custom_call.1} parent=0
    _
  %s5 = ssub.s32 1, %s3
  %s6 = scalar_select 0, %s5, %s3
  $region1: #{tpu_custom_call.1} parent=0
    #allocation2 [shape = 'u8[1024]{0}', space=vmem, size = 0x400, scoped, tag = 'output window, operand 0']
    #allocation3 [shape = 's32[2]{0}', space=sflag, size = 0x8, scoped, tag = 'scoped memory for tpu_custom_call.1']
    %7 = vsyncpa [#allocation3], 0
    %s8 = scalar_lea.sflag [#allocation3], 1
    %9 = vsyncpa %s8, 0
    loop: start=0, step=1, limit=4
    $region2: #{tpu_custom_call.1} parent=1 // loop_pre_header
      _
    $region3: #{tpu_custom_call.1} parent=1 // loop_header
      %s11 = sphi 0, %s15
      %p12 = scmp.ge.s32.totalorder %s11, 4
      %s21 = sphi 0, %s23
      %s24 = sphi 0, %s21
      %s25 = sphi 0, %s24
      %s41 = sphi 0, %s25
      %s47 = sphi 0, %s49
      %s50 = sphi 0, %s47
      %s51 = sphi 0, %s50
      %s67 = sphi 0, %s51
      %s73 = sphi 0, %s75
      %s76 = sphi 0, %s73
      %s77 = sphi 0, %s76
      %s93 = sphi 0, %s77
    $region4: #{tpu_custom_call.1} parent=1 // loop_header_branch
      %14 = sbr.rel (%p12) target = $region8
    $region5: #{tpu_custom_call.1} parent=1 // loop_body
      %s16 = ssub.s32 %s11, 1
      %s17 = ssub.s32 %s11, 2
      %s18 = sadd.s32 %s11, 1
      %s19 = ssub.s32 %s11, %s18
      %p20 = scmp.eq.s32.totalorder %s19, 0
      %s22 = sadd.s32 %s21, 1
      %s23 = scalar_select %p20, %s21, %s22
      %p26 = pneg %p20
      %p27 = scmp.eq.s32.totalorder %s11, 1
      %p28 = por %p26, %p27
      %p29 = scmp.ne.s32.totalorder %s21, %s24
      %p30 = scmp.eq.s32.totalorder %s11, 0
      %p31 = por %p29, %p30
      %p32 = scmp.ne.s32.totalorder %s21, %s24
      %p33 = scmp.eq.s32.totalorder %s16, 1
      %p34 = por %p32, %p33
      %p35 = scmp.ne.s32.totalorder %s24, %s25
      %p36 = scmp.eq.s32.totalorder %s16, 0
      %p37 = por %p35, %p36
      %p38 = scmp.ne.s32.totalorder %s24, %s25
      %p39 = scmp.eq.s32.totalorder %s17, 1
      %p40 = por %p38, %p39
      %p42 = scmp.ne.s32.totalorder %s25, %s41
      %p43 = scmp.eq.s32.totalorder %s17, 0
      %p44 = por %p42, %p43
      %s45 = ssub.s32 %s11, %s18
      %p46 = scmp.eq.s32.totalorder %s45, 0
      %s48 = sadd.s32 %s47, 1
      %s49 = scalar_select %p46, %s47, %s48
      %p52 = pneg %p46
      %p53 = scmp.eq.s32.totalorder %s11, 1
      %p54 = por %p52, %p53
      %p55 = scmp.ne.s32.totalorder %s47, %s50
      %p56 = scmp.eq.s32.totalorder %s11, 0
      %p57 = por %p55, %p56
      %p58 = scmp.ne.s32.totalorder %s47, %s50
      %p59 = scmp.eq.s32.totalorder %s16, 1
      %p60 = por %p58, %p59
      %p61 = scmp.ne.s32.totalorder %s50, %s51
      %p62 = scmp.eq.s32.totalorder %s16, 0
      %p63 = por %p61, %p62
      %p64 = scmp.ne.s32.totalorder %s50, %s51
      %p65 = scmp.eq.s32.totalorder %s17, 1
      %p66 = por %p64, %p65
      %p68 = scmp.ne.s32.totalorder %s51, %s67
      %p69 = scmp.eq.s32.totalorder %s17, 0
      %p70 = por %p68, %p69
      %s71 = ssub.s32 %s11, %s18
      %p72 = scmp.eq.s32.totalorder %s71, 0
      %s74 = sadd.s32 %s73, 1
      %s75 = scalar_select %p72, %s73, %s74
      %p78 = pneg %p72
      %p79 = scmp.eq.s32.totalorder %s11, 1
      %p80 = por %p78, %p79
      %p81 = scmp.ne.s32.totalorder %s73, %s76
      %p82 = scmp.eq.s32.totalorder %s11, 0
      %p83 = por %p81, %p82
      %p84 = scmp.ne.s32.totalorder %s73, %s76
      %p85 = scmp.eq.s32.totalorder %s16, 1
      %p86 = por %p84, %p85
      %p87 = scmp.ne.s32.totalorder %s76, %s77
      %p88 = scmp.eq.s32.totalorder %s16, 0
      %p89 = por %p87, %p88
      %p90 = scmp.ne.s32.totalorder %s76, %s77
      %p91 = scmp.eq.s32.totalorder %s17, 1
      %p92 = por %p90, %p91
      %p94 = scmp.ne.s32.totalorder %s77, %s93
      %p95 = scmp.eq.s32.totalorder %s17, 0
      %p96 = por %p94, %p95
      %p97 = scmp.le.s32.totalorder 1, %s11
      %p98 = scmp.lt.s32.totalorder %s11, 3
      %p99 = pnand %p97, %p98
      %p100 = pneg %p99
      // Predicated region
      $region9: #{tpu_custom_call.1} parent=5 // pred_check
        _
      $region10: #{tpu_custom_call.1} parent=5 // pred_check_branch
        %102 = sbr.rel (%p99) target = $region12
      $region11: #{tpu_custom_call.1} parent=5 // pred_region
        %s103 = ssub.s32 %s11, 1
      $region12: #{tpu_custom_call.1} parent=5 // pred_fallthru
        _
      %p104 = scmp.lt.s32.totalorder %s11, 2
      // Predicated region
      $region13: #{tpu_custom_call.1} parent=5 // pred_check
        %p105 = pneg %p104
      $region14: #{tpu_custom_call.1} parent=5 // pred_check_branch
        %107 = sbr.rel (%p105) target = $region16
      $region15: #{tpu_custom_call.1} parent=5 // pred_region
        // Predicated region
        $region17: #{tpu_custom_call.1} parent=15 // pred_check
          %p108 = pneg %p31
        $region18: #{tpu_custom_call.1} parent=15 // pred_check_branch
          %110 = sbr.rel (%p108) target = $region20
        $region19: #{tpu_custom_call.1} parent=15 // pred_region
          %p111 = scmp.lt.s32.totalorder %s11, 1
          %s112 = scalar_select %p111, %s11, 1
          %s113 = smul.addr %s112, 8
          %s114 = scalar_lea.vmem %s0, %s113
        $region20: #{tpu_custom_call.1} parent=15 // pred_fallthru
          _
        // Predicated region
        $region21: #{tpu_custom_call.1} parent=15 // pred_check
          %p115 = pneg %p57
        $region22: #{tpu_custom_call.1} parent=15 // pred_check_branch
          %117 = sbr.rel (%p115) target = $region24
        $region23: #{tpu_custom_call.1} parent=15 // pred_region
          %p118 = scmp.lt.s32.totalorder %s11, 1
          %s119 = scalar_select %p118, %s11, 1
          %s120 = smul.addr %s119, 8
          %s121 = scalar_lea.vmem %s1, %s120
        $region24: #{tpu_custom_call.1} parent=15 // pred_fallthru
          _
      $region16: #{tpu_custom_call.1} parent=5 // pred_fallthru
        _
      %p122 = scmp.le.s32.totalorder 1, %s11
      %p123 = scmp.lt.s32.totalorder %s11, 3
      %p124 = pnand %p122, %p123
      %p125 = pneg %p124
      // Predicated region
      $region25: #{tpu_custom_call.1} parent=5 // pred_check
        _
      $region26: #{tpu_custom_call.1} parent=5 // pred_check_branch
        %127 = sbr.rel (%p124) target = $region28
      $region27: #{tpu_custom_call.1} parent=5 // pred_region
        %s128 = ssub.s32 %s11, 1
        %p129 = scmp.lt.s32.totalorder %s16, 1
        %s130 = scalar_select %p129, %s16, 1
        %s131 = smul.addr %s130, 8
        %s132 = scalar_lea.vmem %s0, %s131
        %p133 = pneg %p37
        %p134 = pneg %p34
        %p135 = scmp.lt.s32.totalorder %s16, 1
        %s136 = scalar_select %p135, %s16, 1
        %s137 = smul.addr %s136, 8
        %s138 = scalar_lea.vmem %s1, %s137
        %p139 = pneg %p63
        %p140 = pneg %p60
        %p141 = pneg %p89
        %p142 = pneg %p86
        %s143 = sand.u32 %s76, 1
        %s144 = scalar_lea.sflag [#allocation3], %s143
        %s145 = sand.u32 %s76, 1
        %s146 = scalar_lea.vmem [#allocation2], %s145
        %p147 = scmp.lt.s32.totalorder %s16, 1
        %s148 = scalar_select %p147, %s16, 1
        %s149 = smul.addr %s148, 8
        %s150 = scalar_lea.vmem %s0, %s149
        %p151 = scmp.lt.s32.totalorder %s16, 1
        %s152 = scalar_select %p151, %s16, 1
        %s153 = smul.addr %s152, 8
        %s154 = scalar_lea.vmem %s1, %s153
        %v155 = vld [vmem:[%s150] sm:$0xff]
        %v156 = vld [vmem:[%s154] sm:$0xff]
        %vm157 = vcmask 261120
        %v158 = vsel %vm157, %v155, -inf
        %159 = vmax.xlane.f32.xlu0 %v158
        %v160 = vpop.xlane.xlu0 %159
        %v161 = vsub.f32 %v155, %v160
        %v162 = vmul.f32 %v161, 1.442695
        %v163 = vpow.pop %v162
        %v164 = vsel %vm157, %v163, 0.0
        %165 = vadd.xlane.f32.xlu0 %v164
        %v166 = vpop.xlane.xlu0 %165
        %v167 = vlaneseq
        %v168 = vand.u32 %v167, 127
        %169 = vset.pattern.permute.xlu0 0
        %170 = vperm.xlu0 %169, %v156
        %v171 = vpop.permute.xlu0 %170
        %vm172 = vcmp.eq.s32.totalorder %v168, %v171
        %v173 = vsel %vm172, %v155, 0.0
        %v174 = vsel %vm157, %v173, 0.0
        %175 = vadd.xlane.f32.xlu0 %v174
        %v176 = vpop.xlane.xlu0 %175
        %v177 = vlog2.pop %v166
        %v178 = vmul.f32 %v177, 0.6931472
        %v179 = vadd.f32 %v160, %v178
        %v180 = vsub.f32 %v179, %v176
        %v181 = vmax.f32 %v180, 0.0
        %v182 = vsub.f32 0.0, %v181
        %v183 = vmul.f32 %v182, 1.442695
        %v184 = vpow.pop %v183
        %v185 = vsub.f32 1.0, %v184
        %v186 = vmul.f32 %v185, %v185
        %v187 = vmul.f32 %v186, 0.25
        %v188 = vmul.f32 %v187, %v181
        %s189 = smul.u32 %s16, 8
        %v190 = vlaneseq
        %v191 = vshrl.u32 %v190, 7
        %v192 = vstv %s189
        %v193 = vadd.s32 %v192, %v191
        %vm194 = vcmp.lt.s32.totalorder %v193, 13
        %v195 = vsel %vm194, %v188, 0.0
        %vm196 = vcmask 7168
        %v197 = vsel %vm196, %v195, 0.0
        %198 = vadd.xlane.f32.xlu0 %v197
        %v199 = vpop.xlane.xlu0 %198
        %v200 = vrot.slane %v199, 4
        %v201 = vadd.f32 %v199, %v200
        %v202 = vrot.slane %v201, 2
        %v203 = vadd.f32 %v201, %v202
        %v204 = vrot.slane %v203, 1
        %v205 = vadd.f32 %v203, %v204
        %s206 = vtos %v205
        %v207 = vstv %s206
        %208 = vst [vmem:[%s146] sm:$0x1] %v207
        %s209 = sand.u32 %s76, 1
        %s210 = scalar_lea.sflag [#allocation3], %s209
        %s211 = sand.u32 %s76, 1
        %s212 = scalar_lea.vmem [#allocation2], %s211
        // Predicated region
        $region29: #{tpu_custom_call.1} parent=27 // pred_check
          %p213 = pneg %p86
        $region30: #{tpu_custom_call.1} parent=27 // pred_check_branch
          %215 = sbr.rel (%p213) target = $region32
        $region31: #{tpu_custom_call.1} parent=27 // pred_region
          %s217 = ssub.s32 16, 16
          %218 = vsyncadd %s210, %s217
          %s219 = smul.addr %s16, 16
          %s220 = scalar_lea.hbm %s2, %s219
          %s222 = sshll.u32 %s212, 4
          %s223 = int_to_ptr.vmem [resolvable:$true] %s222
          %225 = dma.vmem_to_hbm [thread:$0]  %s223, 16, %s220, %s210
        $region32: #{tpu_custom_call.1} parent=27 // pred_fallthru
          _
      $region28: #{tpu_custom_call.1} parent=5 // pred_fallthru
        _
      %p226 = scmp.le.s32.totalorder 2, %s11
      // Predicated region
      $region33: #{tpu_custom_call.1} parent=5 // pred_check
        %p227 = pneg %p226
      $region34: #{tpu_custom_call.1} parent=5 // pred_check_branch
        %229 = sbr.rel (%p227) target = $region36
      $region35: #{tpu_custom_call.1} parent=5 // pred_region
        %s230 = ssub.s32 %s11, 2
        // Predicated region
        $region37: #{tpu_custom_call.1} parent=35 // pred_check
          %p231 = pneg %p92
        $region38: #{tpu_custom_call.1} parent=35 // pred_check_branch
          %233 = sbr.rel (%p231) target = $region40
        $region39: #{tpu_custom_call.1} parent=35 // pred_region
          %s234 = sand.u32 %s77, 1
          %s235 = scalar_lea.sflag [#allocation3], %s234
          %s236 = sand.u32 %s77, 1
          %s237 = scalar_lea.vmem [#allocation2], %s236
          %238 = dma.done %s235, 16
        $region40: #{tpu_custom_call.1} parent=35 // pred_fallthru
          _
      $region36: #{tpu_custom_call.1} parent=5 // pred_fallthru
        _
    $region6: #{tpu_custom_call.1} parent=1 // loop_footer
      %s15 = sadd.s32 1, %s11
    $region7: #{tpu_custom_call.1} parent=1 // loop_footer_branch
      %10 = sbr.rel target = $region3
    $region8: #{tpu_custom_call.1} parent=1 // loop_exit
      _
    %239 = vsyncpa [#allocation3], 1
    %s240 = scalar_lea.sflag [#allocation3], 1
    %241 = vsyncpa %s240, 1

</llo_original>
